<compile_context>
chip_gen: v7x
topology: tpu7x:2x2x1
jax: 0.10.0
libtpu: 0.0.40
codegen_flags: <defaults>
</compile_context>

<pallas_src>
import numpy as np
import jax
import jax.numpy as jnp
from jax.experimental import pallas as pl
from jax.experimental.pallas import tpu as pltpu


def _drop_path_kernel(s_ref, x_ref, o_ref):
    # s_ref: (B_TILE, 1) float32 per-sample scale (0 or 1/keep_prob).
    # x_ref/o_ref: (B_TILE, F_TILE) data tile in x's dtype.
    o_ref[...] = (x_ref[...].astype(jnp.float32) * s_ref[...]).astype(o_ref.dtype)


def _sublane_multiple(itemsize: int) -> int:
    """Dtype-aware sublane packing multiple (f32: 8, bf16: 16, int8/fp8: 32)."""
    if itemsize >= 4:
        return 8
    if itemsize == 2:
        return 16
    return 32


def _vmem_capacity_bytes() -> int:
    """Physical VMEM of the current TPU generation; conservative fallback."""
    try:
        info = pltpu.get_tpu_info()
        for attr in ("vmem_capacity_bytes", "vmem_size_bytes", "vmem_bytes"):
            v = getattr(info, attr, None)
            if v:
                return int(v)
    except Exception:
        pass
    return 64 * 1024 * 1024  # v7x-sized fallback (smallest of the fleet)


def _choose_tiles(N, F, itemsize, target_bytes):
    """Pick a (B_TILE, F_TILE) block ~target_bytes, sublane/lane friendly."""
    sub = _sublane_multiple(itemsize)
    min_rows = N if N <= sub else sub

    # Feature tile: full extent, shrunk in halves (staying a multiple of 128)
    # while even the minimal row-stripe overshoots the target.
    f_tile = F
    if F % 128 == 0:
        while (min_rows * f_tile * itemsize > target_bytes
               and f_tile % 2 == 0 and (f_tile // 2) % 128 == 0):
            f_tile //= 2
    # F % 128 != 0 -> full-extent F tile (caller padded F if it was too big).

    # Batch tile: full batch if small, else a sublane-dense stripe sized so the
    # block is ~target_bytes (no artificial 256-row cap).
    if N <= sub:
        b_tile = N                              # full-extent block: always legal
    else:
        rows_fit = max(1, target_bytes // max(1, f_tile * itemsize))
        rows = min(N, rows_fit)
        b_tile = max(sub, (rows // sub) * sub)
    return b_tile, f_tile


def _ensure_split(N, F, b_tile, f_tile, itemsize):
    """Force >= 2 blocks along a parallel axis for non-trivial tensors (v7x megacore)."""
    sub = _sublane_multiple(itemsize)
    total_bytes = N * F * itemsize
    if total_bytes < (2 << 20):
        return b_tile, f_tile                   # tiny tensor: not worth splitting
    if pl.cdiv(N, b_tile) * pl.cdiv(F, f_tile) >= 2:
        return b_tile, f_tile
    if f_tile % 256 == 0:                       # prefer splitting along F (lane axis)
        f_tile //= 2
    elif N > sub and b_tile >= 2 * sub:         # otherwise split along batch
        b_tile = ((b_tile // 2 + sub - 1) // sub) * sub
    return b_tile, f_tile


def drop_path_pallas(x, *, drop_prob: float, rng_key, training: bool = True,
                     scale_by_keep: bool = True):
    """Pallas implementation of timm's drop_path (per-sample stochastic depth)."""
    if drop_prob == 0.0 or not training:
        return x
    keep_prob = 1.0 - drop_prob

    N = x.shape[0]
    F = int(np.prod(x.shape[1:])) if x.ndim > 1 else 1
    x2 = x.reshape(N, F)
    itemsize = jnp.dtype(x.dtype).itemsize

    # Per-sample keep mask -> float32 scale vector (no quantization of 1/keep_prob).
    keep = jax.random.bernoulli(rng_key, p=keep_prob, shape=(N, 1))
    scale = keep.astype(jnp.float32)
    if keep_prob > 0.0 and scale_by_keep:
        scale = scale / jnp.float32(keep_prob)

    # Per-generation VMEM budgeting.
    vmem_cap = _vmem_capacity_bytes()
    vmem_limit = min(vmem_cap // 2, 64 << 20)      # v7x: 32 MiB, v5e/v6e: 64 MiB
    target_bytes = max(1 << 20, vmem_limit // 8)   # v7x: 4 MiB,  v5e/v6e: 8 MiB

    # If F is not a multiple of 128 and a full-extent F tile would blow the
    # budget, pad F up to a multiple of 128 so it can be tiled lane-densely.
    sub = _sublane_multiple(itemsize)
    F_work, padded = F, False
    if F % 128 != 0:
        min_rows = N if N <= sub else sub
        if min_rows * F * itemsize > target_bytes:
            F_work = ((F + 127) // 128) * 128
            x2 = jnp.pad(x2, ((0, 0), (0, F_work - F)))
            padded = True

    B_TILE, F_TILE = _choose_tiles(N, F_work, itemsize, target_bytes)
    B_TILE, F_TILE = _ensure_split(N, F_work, B_TILE, F_TILE, itemsize)
    grid = (pl.cdiv(N, B_TILE), pl.cdiv(F_work, F_TILE))

    out = pl.pallas_call(
        _drop_path_kernel,
        out_shape=jax.ShapeDtypeStruct((N, F_work), x.dtype),
        grid=grid,
        in_specs=[
            pl.BlockSpec((B_TILE, 1), lambda i, j: (i, 0)),       # per-sample scale (f32)
            pl.BlockSpec((B_TILE, F_TILE), lambda i, j: (i, j)),  # data tile
        ],
        out_specs=pl.BlockSpec((B_TILE, F_TILE), lambda i, j: (i, j)),
        compiler_params=pltpu.CompilerParams(
            dimension_semantics=("parallel", "parallel"),
            vmem_limit_bytes=vmem_limit,
        ),
    )(scale, x2)

    if padded:
        out = out[:, :F]
    return out.reshape(x.shape)


if __name__ == "__main__":
    key = jax.random.PRNGKey(0)
    data_key, mask_key, mask_key2 = jax.random.split(key, 3)

    drop_prob = 0.25
    keep_prob = 1.0 - drop_prob

    # ---- f32, NCHW, training=True ----
    x = jax.random.normal(data_key, (2, 4, 16, 16), dtype=jnp.float32)
    y = drop_path_pallas(x, drop_prob=drop_prob, rng_key=mask_key,
                         training=True, scale_by_keep=True)
    y = jax.block_until_ready(y)
    xn = np.asarray(x, dtype=np.float32)
    yn = np.asarray(y, dtype=np.float32)
    for b in range(xn.shape[0]):
        dropped = np.allclose(yn[b], 0.0)
        kept = np.allclose(yn[b], xn[b] / keep_prob, rtol=1e-5, atol=1e-5)
        assert dropped or kept, f"sample {b}: not a valid drop-path output"

    # ---- bf16 path (exercises 16-row sublane rounding + f32 scale) ----
    xb = jax.random.normal(data_key, (16, 8, 32, 32), dtype=jnp.bfloat16)
    yb = drop_path_pallas(xb, drop_prob=drop_prob, rng_key=mask_key2,
                          training=True, scale_by_keep=True)
    yb = jax.block_until_ready(yb)
    xbn = np.asarray(xb, dtype=np.float32)
    ybn = np.asarray(yb, dtype=np.float32)
    for b in range(xbn.shape[0]):
        dropped = np.allclose(ybn[b], 0.0)
        kept = np.allclose(ybn[b], xbn[b] / keep_prob, rtol=2e-2, atol=2e-2)
        assert dropped or kept, f"bf16 sample {b}: not a valid drop-path output"

    # ---- eval / drop_prob=0 paths: identity ----
    y_eval = drop_path_pallas(x, drop_prob=drop_prob, rng_key=mask_key,
                              training=False)
    assert np.allclose(np.asarray(y_eval), xn)
    y_p0 = drop_path_pallas(x, drop_prob=0.0, rng_key=mask_key, training=True)
    assert np.allclose(np.asarray(y_p0), xn)

    print("KERNEL_OK")
</pallas_src>

<mosaic_0001>
module attributes {stable_mosaic.version = 11 : i64} {
  func.func @_drop_path_kernel(%arg0: i32, %arg1: i32, %arg2: memref<2x1xf32, #tpu.memory_space<vmem>>, %arg3: memref<2x1024xf32, #tpu.memory_space<vmem>>, %arg4: memref<2x1024xf32, #tpu.memory_space<vmem>>) attributes {dimension_semantics = [#tpu.dimension_semantics<parallel>, #tpu.dimension_semantics<parallel>], iteration_bounds = array<i64: 1, 1>, scalar_prefetch = 0 : i64, scratch_operands = 0 : i64, tpu.core_type = #tpu.core_type<tc>, window_params = [{transform_indices = @transform_0, window_bounds = array<i64: 2, 1>}, {transform_indices = @transform_1, window_bounds = array<i64: 2, 1024>}, {transform_indices = @transform_2, window_bounds = array<i64: 2, 1024>}]} {
    %c0 = arith.constant 0 : index
    %c0_0 = arith.constant 0 : index
    %0 = vector.load %arg3[%c0, %c0_0] : memref<2x1024xf32, #tpu.memory_space<vmem>>, vector<2x1024xf32>
    %c0_1 = arith.constant 0 : index
    %c0_2 = arith.constant 0 : index
    %1 = vector.load %arg2[%c0_1, %c0_2] : memref<2x1xf32, #tpu.memory_space<vmem>>, vector<2x1xf32>
    %2 = vector.broadcast %1 : vector<2x1xf32> to vector<2x1024xf32>
    %3 = arith.mulf %0, %2 : vector<2x1024xf32>
    %c0_3 = arith.constant 0 : index
    %c0_4 = arith.constant 0 : index
    %4 = vector.load %arg4[%c0_3, %c0_4] : memref<2x1024xf32, #tpu.memory_space<vmem>>, vector<2x1024xf32>
    tpu.vector_store %arg4[%c0_3, %c0_4], %3 {strides = array<i32>} : memref<2x1024xf32, #tpu.memory_space<vmem>>, vector<2x1024xf32>,
    return
  }
  func.func @transform_0(%arg0: i32, %arg1: i32) -> (i32, i32) {
    %c0_i32 = arith.constant 0 : i32
    %c0_i32_0 = arith.constant 0 : i32
    return %arg0, %c0_i32 : i32, i32
  }
  func.func @transform_1(%arg0: i32, %arg1: i32) -> (i32, i32) {
    %c0_i32 = arith.constant 0 : i32
    return %arg0, %arg1 : i32, i32
  }
  func.func @transform_2(%arg0: i32, %arg1: i32) -> (i32, i32) {
    %c0_i32 = arith.constant 0 : i32
    return %arg0, %arg1 : i32, i32
  }
}

</mosaic_0001>

<llo_original>
// kernel: tpu_custom_call.1
$region0: #{tpu_custom_call.1}
  #allocation0 [shape = 'u32[]', space=smem, size = 0x4, offset = 0x4, fixed_abs, tag = 'smem constant byte address 0x4 - core index']
  #allocation1 [shape = 'u32[144,128]{1,0:T(1,128)}', space=vmem, size = 0x12000, scoped, tag = 'internal scratch']
  %s0 = inlined_call_operand.vmem [shape: f32[2,1], index: 0, kind: input, shape index: {}]
  %s1 = inlined_call_operand.hbm [shape: f32[2,1024], index: 1, kind: input, shape index: {}]
  %s2 = inlined_call_operand.hbm [shape: f32[2,1024], index: 2, kind: output, shape index: {}]
  %s3 = sld [smem:[#allocation0]]
  $region22: #{tpu_custom_call.1} parent=0
    _
  %s5 = ssub.s32 1, %s3
  %s6 = scalar_select 0, %s5, %s3
  $region1: #{tpu_custom_call.1} parent=0
    #allocation2 [shape = 'u8[8192]{0}', space=vmem, size = 0x2000, scoped, tag = 'input window, operand 1, single buffered']
    #allocation3 [shape = 's32[1]{0}', space=sflag, size = 0x4, scoped, tag = 'scoped memory for tpu_custom_call.1']
    #allocation4 [shape = 's32[1]{0}', space=sflag, size = 0x4, scoped, tag = 'scoped memory for tpu_custom_call.1']
    #allocation5 [shape = 'u8[8192]{0}', space=vmem, size = 0x2000, scoped, tag = 'output window, operand 0, single buffered']
    %7 = vsyncpa [#allocation3], 0
    %8 = vsyncpa [#allocation4], 0
    // Predicated region
    $region2: #{tpu_custom_call.1} parent=1 // pred_check
      _
    $region3: #{tpu_custom_call.1} parent=1 // pred_check_branch
      %10 = sbr.rel (0) target = $region5
    $region4: #{tpu_custom_call.1} parent=1 // pred_region
      _
    $region5: #{tpu_custom_call.1} parent=1 // pred_fallthru
      _
    // Predicated region
    $region6: #{tpu_custom_call.1} parent=1 // pred_check
      _
    $region7: #{tpu_custom_call.1} parent=1 // pred_check_branch
      %12 = sbr.rel (0) target = $region9
    $region8: #{tpu_custom_call.1} parent=1 // pred_region
      %s14 = ssub.s32 256, 256
      %15 = vsyncadd [#allocation3], %s14
      %s17 = sshll.u32 [#allocation2], 4
      %s18 = int_to_ptr.vmem [resolvable:$true] %s17
      %20 = dma.hbm_to_vmem [thread:$0]  %s1, 256, %s18, [#allocation3]
    $region9: #{tpu_custom_call.1} parent=1 // pred_fallthru
      _
    // Predicated region
    $region10: #{tpu_custom_call.1} parent=1 // pred_check
      _
    $region11: #{tpu_custom_call.1} parent=1 // pred_check_branch
      %22 = sbr.rel (0) target = $region13
    $region12: #{tpu_custom_call.1} parent=1 // pred_region
      %23 = dma.done [#allocation3], 256
    $region13: #{tpu_custom_call.1} parent=1 // pred_fallthru
      _
    %v24 = vld [vmem:[#allocation2] sm:$0xff]
    %v25 = vld [vmem:[#allocation2 + $0x8] sm:$0xff]
    %v26 = vld [vmem:[%s0] sm:$0x3]
    %28 = vset.pattern.permute.xlu0 0
    %29 = vperm.xlu0 %28, %v26
    %v30 = vpop.permute.xlu0 %29
    %v32 = vunpack.c.l.s4 269488144
    %v33 = vunpack.c.0.s8 %v32
    %v34 = vlaneseq
    %v35 = vshrl.u32 %v34, 7
    %v36 = vsub.s32 %v33, %v35
    %v37 = vrot.slane %v30, %v36
    %v39 = vmul.f32 %v24, %v37
    %v40 = vmul.f32 %v25, %v37
    %41 = vst [vmem:[#allocation5] sm:$0xff] %v39
    %42 = vst [vmem:[#allocation5 + $0x8] sm:$0xff] %v40
    // Predicated region
    $region14: #{tpu_custom_call.1} parent=1 // pred_check
      _
    $region15: #{tpu_custom_call.1} parent=1 // pred_check_branch
      %44 = sbr.rel (0) target = $region17
    $region16: #{tpu_custom_call.1} parent=1 // pred_region
      %s46 = ssub.s32 256, 256
      %47 = vsyncadd [#allocation4], %s46
      %s49 = sshll.u32 [#allocation5], 4
      %s50 = int_to_ptr.vmem [resolvable:$true] %s49
      %52 = dma.vmem_to_hbm [thread:$0]  %s50, 256, %s2, [#allocation4]
    $region17: #{tpu_custom_call.1} parent=1 // pred_fallthru
      _
    // Predicated region
    $region18: #{tpu_custom_call.1} parent=1 // pred_check
      _
    $region19: #{tpu_custom_call.1} parent=1 // pred_check_branch
      %54 = sbr.rel (0) target = $region21
    $region20: #{tpu_custom_call.1} parent=1 // pred_region
      %55 = dma.done [#allocation4], 256
    $region21: #{tpu_custom_call.1} parent=1 // pred_fallthru
      _
    %56 = vsyncpa [#allocation3], 1
    %57 = vsyncpa [#allocation4], 1

</llo_original>
